<compile_context>
chip_gen: v6e
topology: v6e:2x2x1
jax: 0.10.0
libtpu: 0.0.40
codegen_flags: <defaults>
</compile_context>

<pallas_src>
import functools

import jax
import jax.numpy as jnp
from jax.experimental import pallas as pl
from jax.experimental.pallas import tpu as pltpu

# ---------------------------------------------------------------------------
# problem sizes (small, consistent with an image VQGAN)
# ---------------------------------------------------------------------------
N, C, H, W = 2, 4, 16, 16     # images:  (N, C, H, W) in the reference
HIDDEN = 8                    # channels of the latent entering decoder.final_conv
FEAT = 8                      # LPIPS-surrogate feature channels
P_TOTAL = N * H * W           # flattened pixel count (lane axis)

_VMEM = pl.BlockSpec(memory_space=pltpu.MemorySpace.VMEM)
_SMEM = pl.BlockSpec(memory_space=pltpu.MemorySpace.SMEM)


# ---------------------------------------------------------------------------
# in-kernel helpers (unrolled VPU outer-product contractions, no MXU)
# ---------------------------------------------------------------------------
def _small_contract(w_cols, rows):
    """out[o, p] = sum_k w_cols[o, k] * rows[k, p]   (tiny K, unrolled on VPU).

    w_cols : (O, K) small weight slab, rows : (K, P) lane-dense slab.
    """
    k_total = rows.shape[0]
    acc = w_cols[:, 0:1] * rows[0:1, :]
    for k in range(1, k_total):
        acc = acc + w_cols[:, k:k + 1] * rows[k:k + 1, :]
    return acc


# ---------------------------------------------------------------------------
# Pallas kernels
# ---------------------------------------------------------------------------
def _generator_loss_kernel(xT_ref, hT_ref, wdecT_ref, wfT_ref, wlinT_ref,
                           wdT_ref, bd_ref, o_ref, *, perceptual_weight):
    """Fused generator-side losses (decode + recon + perceptual + adv).

    xT_ref    : (C, P)        flattened image, channels on sublanes
    hT_ref    : (HIDDEN, P)   flattened latent entering decoder.final_conv
    wdecT_ref : (C, HIDDEN)   decoder final 1x1 conv (transposed)
    wfT_ref   : (F, C)        LPIPS-surrogate feature conv (1x1, transposed)
    wlinT_ref : (F, 1)        LPIPS-surrogate linear head
    wdT_ref   : (C, 1)        patch discriminator 1x1 conv weight
    bd_ref    : (1,)          patch discriminator bias (SMEM scalar)
    o_ref     : (4,)  SMEM    [recon_mean, perceptual_mean, perceptual_recon, adv_raw]
    """
    xT = xT_ref[...]
    hT = hT_ref[...]
    c, p = xT.shape

    # --- decoder final 1x1 conv (fused, VPU): xh (C, P) --------------------
    xh = _small_contract(wdecT_ref[...], hT)

    # --- reconstruction L1:  mean(|x - x_hat|) ------------------------------
    recon_mean = jnp.sum(jnp.abs(xT - xh)) / (p * c)

    # --- perceptual loss (LPIPS surrogate) ----------------------------------
    # TODO(synk): real LPIPS uses a pretrained VGG16 backbone; here a
    # deterministic 1x1-conv feature extractor + unit-normalisation + linear
    # head mimics the LPIPS structure with synthetic weights.
    wfT = wfT_ref[...]                             # (F, C)
    fx = _small_contract(wfT, xT)                  # (F, P)
    fy = _small_contract(wfT, xh)                  # (F, P)
    fx = fx * jax.lax.rsqrt(jnp.sum(fx * fx, axis=0, keepdims=True) + 1e-10)
    fy = fy * jax.lax.rsqrt(jnp.sum(fy * fy, axis=0, keepdims=True) + 1e-10)
    diff2 = (fx - fy) * (fx - fy)
    perceptual_mean = jnp.sum(wlinT_ref[...] * diff2) / p

    perceptual_recon = recon_mean + perceptual_weight * perceptual_mean

    # --- adversarial generator loss:  -mean(D(x_hat)) -----------------------
    # -mean_p(sum_c wd_c * xh[c,p] + bd) == -(sum_c wd_c * mean_p xh[c,:] + bd)
    xh_cmean = jnp.sum(xh, axis=1, keepdims=True) / p        # (C, 1)
    adv_raw = -(jnp.sum(wdT_ref[...] * xh_cmean) + bd_ref[0])

    o_ref[0] = recon_mean
    o_ref[1] = perceptual_mean
    o_ref[2] = perceptual_recon
    o_ref[3] = adv_raw


def _disc_logits_kernel(xT_ref, hT_ref, wdecT_ref, wdT_ref, bd_ref,
                        real_ref, fake_ref):
    """Fused patch discriminator on real and (decoded) fake images.

    Outputs lane-dense (1, P) logit rows (reshaped to (N, H*W) on the host).
    """
    xT = xT_ref[...]                                # (C, P) real image
    xh = _small_contract(wdecT_ref[...], hT_ref[...])   # (C, P) decoded fake
    wdT = wdT_ref[...]                              # (C, 1)
    bd = bd_ref[0]
    real_ref[...] = jnp.sum(xT * wdT, axis=0, keepdims=True) + bd
    fake_ref[...] = jnp.sum(xh * wdT, axis=0, keepdims=True) + bd


def _hinge_d_loss_kernel(real_ref, fake_ref, o_ref):
    """hinge_d_loss = 0.5 * (mean(relu(1 - real)) + mean(relu(1 + fake)))"""
    real = real_ref[...]
    fake = fake_ref[...]
    loss_real = jnp.sum(jnp.maximum(1.0 - real, 0.0)) / real.size
    loss_fake = jnp.sum(jnp.maximum(1.0 + fake, 0.0)) / fake.size
    o_ref[0] = 0.5 * (loss_real + loss_fake)


# ---------------------------------------------------------------------------
# pallas_call wrappers
# ---------------------------------------------------------------------------
# TODO(synk): at real image sizes (P ~ 1e5-1e6) add a 1-D grid over the pixel
# axis with BlockSpec tiling + VMEM scratch accumulators (pl.when init/finish)
# and dimension_semantics=("parallel",) partials for v7x's 2 TensorCores; at
# P=512 a single monolithic block is optimal (one launch, no pipeline needed).
def generator_loss_core(xT, hT, wdecT, wfT, wlinT, wdT, bd, perceptual_weight):
    kernel = functools.partial(_generator_loss_kernel,
                               perceptual_weight=float(perceptual_weight))
    return pl.pallas_call(
        kernel,
        out_shape=jax.ShapeDtypeStruct((4,), jnp.float32),
        in_specs=[_VMEM, _VMEM, _VMEM, _VMEM, _VMEM, _VMEM, _SMEM],
        out_specs=_SMEM,
    )(xT, hT, wdecT, wfT, wlinT, wdT, bd)


def disc_forward_fused(xT, hT, wdecT, wdT, bd):
    """Single launch: decode fake image and produce real/fake patch logits."""
    p = xT.shape[1]
    real, fake = pl.pallas_call(
        _disc_logits_kernel,
        out_shape=(jax.ShapeDtypeStruct((1, p), jnp.float32),
                   jax.ShapeDtypeStruct((1, p), jnp.float32)),
        in_specs=[_VMEM, _VMEM, _VMEM, _VMEM, _SMEM],
        out_specs=(_VMEM, _VMEM),
    )(xT, hT, wdecT, wdT, bd)
    # (1, P) -> (N, H*W): lane-dense both ways, reshape is host-side metadata.
    return real.reshape(N, H * W), fake.reshape(N, H * W)


def hinge_d_loss(disc_real, disc_fake):
    out = pl.pallas_call(
        _hinge_d_loss_kernel,
        out_shape=jax.ShapeDtypeStruct((1,), jnp.float32),
        in_specs=[_VMEM, _VMEM],
        out_specs=_SMEM,
    )(disc_real, disc_fake)
    return out[0]


# ---------------------------------------------------------------------------
# plain-JAX references used only for calculate_lambda's autodiff path.
# NOTE: these mirror _generator_loss_kernel exactly (same eps / weighting /
# normalisation); keep them in sync with any kernel math change.
# ---------------------------------------------------------------------------
def _ref_perceptual_recon(xT, xhT, wfT, wlinT, pw):
    c, p = xT.shape
    recon = jnp.sum(jnp.abs(xT - xhT)) / (p * c)
    fx = wfT @ xT
    fy = wfT @ xhT
    fx = fx * jax.lax.rsqrt(jnp.sum(fx * fx, axis=0, keepdims=True) + 1e-10)
    fy = fy * jax.lax.rsqrt(jnp.sum(fy * fy, axis=0, keepdims=True) + 1e-10)
    perceptual = jnp.sum(wlinT * (fx - fy) ** 2) / p
    return recon + pw * perceptual


def _ref_adv(xhT, wdT, bd):
    logits = jnp.sum(xhT * wdT, axis=0) + bd[0]
    return -jnp.mean(logits)


# ---------------------------------------------------------------------------
# VQGANLoss module (JAX / Pallas)
# ---------------------------------------------------------------------------
class VQGANLossPallas:
    def __init__(self, config, key):
        self.perceptual_weight = config['perceptual_weight']
        self.adv_weight = config['adv_weight']
        self.use_adv = False

        k1, k2, k3, k4 = jax.random.split(key, 4)
        # LPIPS-surrogate parameters (deterministic synthetic weights)
        self.wfT = 0.5 * jax.random.normal(k1, (FEAT, C), jnp.float32)
        self.wlinT = jax.random.uniform(k2, (FEAT, 1), jnp.float32)
        # patch discriminator (1x1 conv C -> 1)
        self.wdT = 0.3 * jax.random.normal(k3, (C, 1), jnp.float32)
        self.bd = jnp.zeros((1,), jnp.float32)
        # synthetic stand-in for vqgan.vqvae.decoder.final_conv (1x1 conv HIDDEN -> C)
        self.w_final = 0.2 * jax.random.normal(k4, (HIDDEN, C), jnp.float32)

    def enable_adv(self):
        self.use_adv = True

    # ---- helpers -----------------------------------------------------------
    @staticmethod
    def _nchw_to_cp(x_nchw):
        # NCHW -> (C, N*H*W): channels on sublanes, pixels lane-dense.
        n, c, h, w = x_nchw.shape
        return jnp.transpose(x_nchw, (1, 0, 2, 3)).reshape(c, n * h * w)

    def calculate_lambda(self, hT, xT):
        # TODO(synk): torch.autograd.grad through the full VQGAN decoder has no
        # in-kernel Pallas equivalent; jax.grad over the plain-JAX surrogate of
        # decoder.final_conv is used here (same norm-ratio / clamp semantics).
        pw = self.perceptual_weight

        def decode(w):                       # w: (HIDDEN, C) "last layer" weight
            return jnp.einsum('hc,hp->cp', w, hT)

        def nll_fn(w):
            return _ref_perceptual_recon(xT, decode(w), self.wfT, self.wlinT, pw)

        def gan_fn(w):
            return _ref_adv(decode(w), self.wdT, self.bd)

        g_nll = jax.grad(nll_fn)(self.w_final)
        g_gan = jax.grad(gan_fn)(self.w_final)
        lam = jnp.linalg.norm(g_nll) / (jnp.linalg.norm(g_gan) + 1e-4)
        lam = jax.lax.stop_gradient(jnp.clip(lam, 0.0, 1e4))
        return self.adv_weight * lam

    # ---- losses ------------------------------------------------------------
    def generator_loss(self, x_nchw, h_latent_nchw, commit_loss):
        xT = self._nchw_to_cp(x_nchw)        # (C, P)
        hT = self._nchw_to_cp(h_latent_nchw) # (HIDDEN, P)

        scalars = generator_loss_core(xT, hT, self.w_final.T, self.wfT,
                                      self.wlinT, self.wdT, self.bd,
                                      self.perceptual_weight)
        recon_mean, perceptual_mean, perceptual_recon, adv_raw = (
            scalars[0], scalars[1], scalars[2], scalars[3])

        lam = self.calculate_lambda(hT, xT)
        disc_weight = 1.0 if self.use_adv else 0.0
        adv_loss = disc_weight * lam * adv_raw
        total_loss = perceptual_recon + commit_loss + adv_loss

        return {
            'recon_loss': recon_mean,
            'perceptual_loss': perceptual_mean,
            'perceptual_recon_loss': perceptual_recon,
            'commit_loss': commit_loss,
            'adv_loss': adv_loss,
            'total_loss': total_loss,
        }

    def discriminator_loss(self, disc_real, disc_fake):
        disc_weight = 1.0 if self.use_adv else 0.0
        disc_loss = disc_weight * hinge_d_loss(disc_real, disc_fake)
        return {'disc_real': disc_real, 'disc_fake': disc_fake,
                'disc_loss': disc_loss}

    def __call__(self, mode, **kwargs):
        assert mode in ['generator', 'discriminator']
        if mode == 'generator':
            return self.generator_loss(**kwargs)
        return self.discriminator_loss(**kwargs)


# ---------------------------------------------------------------------------
# main
# ---------------------------------------------------------------------------
if __name__ == "__main__":
    key = jax.random.PRNGKey(0)
    k_x, k_h, k_mod = jax.random.split(key, 3)

    config = {'perceptual_weight': 0.1, 'adv_weight': 0.5}
    loss_mod = VQGANLossPallas(config, k_mod)
    loss_mod.enable_adv()

    x = jax.random.normal(k_x, (N, C, H, W), jnp.float32)          # NCHW like torch
    h_latent = jax.random.normal(k_h, (N, HIDDEN, H, W), jnp.float32)
    commit_loss = jnp.float32(0.25)

    # generator mode (single fused Pallas kernel for decode + all losses)
    gen_dict = loss_mod('generator', x_nchw=x, h_latent_nchw=h_latent,
                        commit_loss=commit_loss)
    jax.block_until_ready(gen_dict['total_loss'])

    # discriminator mode: one fused kernel for real+fake patch logits
    # (lane-dense (N, H*W) outputs), then the hinge-loss kernel inside
    # discriminator_loss.
    xT = VQGANLossPallas._nchw_to_cp(x)
    hT = VQGANLossPallas._nchw_to_cp(h_latent)
    disc_real, disc_fake = disc_forward_fused(xT, hT, loss_mod.w_final.T,
                                              loss_mod.wdT, loss_mod.bd)
    disc_dict = loss_mod('discriminator', disc_real=disc_real,
                         disc_fake=disc_fake)
    jax.block_until_ready(disc_dict['disc_loss'])

    print("KERNEL_OK")
</pallas_src>

<mosaic_0001>
module attributes {stable_mosaic.version = 11 : i64} {
  func.func @_generator_loss_kernel(%arg0: memref<4x512xf32, #tpu.memory_space<vmem>>, %arg1: memref<8x512xf32, #tpu.memory_space<vmem>>, %arg2: memref<4x8xf32, #tpu.memory_space<vmem>>, %arg3: memref<8x4xf32, #tpu.memory_space<vmem>>, %arg4: memref<8x1xf32, #tpu.memory_space<vmem>>, %arg5: memref<4x1xf32, #tpu.memory_space<vmem>>, %arg6: memref<1xf32, #tpu.memory_space<smem>>, %arg7: memref<4xf32, #tpu.memory_space<smem>>) attributes {dimension_semantics = [], scalar_prefetch = 0 : i64, scratch_operands = 0 : i64, tpu.core_type = #tpu.core_type<tc>} {
    %c0 = arith.constant 0 : index
    %c0_0 = arith.constant 0 : index
    %0 = vector.load %arg0[%c0, %c0_0] : memref<4x512xf32, #tpu.memory_space<vmem>>, vector<4x512xf32>
    %c0_1 = arith.constant 0 : index
    %c0_2 = arith.constant 0 : index
    %1 = vector.load %arg1[%c0_1, %c0_2] : memref<8x512xf32, #tpu.memory_space<vmem>>, vector<8x512xf32>
    %c0_3 = arith.constant 0 : index
    %c0_4 = arith.constant 0 : index
    %2 = vector.load %arg2[%c0_3, %c0_4] : memref<4x8xf32, #tpu.memory_space<vmem>>, vector<4x8xf32>
    %3 = vector.extract_strided_slice %2 {offsets = [0, 0], sizes = [4, 1], strides = [1, 1]} : vector<4x8xf32> to vector<4x1xf32>
    %4 = vector.extract_strided_slice %1 {offsets = [0, 0], sizes = [1, 512], strides = [1, 1]} : vector<8x512xf32> to vector<1x512xf32>
    %5 = vector.broadcast %3 : vector<4x1xf32> to vector<4x512xf32>
    %6 = vector.broadcast %4 : vector<1x512xf32> to vector<4x512xf32>
    %7 = arith.mulf %5, %6 : vector<4x512xf32>
    %8 = vector.extract_strided_slice %2 {offsets = [0, 1], sizes = [4, 1], strides = [1, 1]} : vector<4x8xf32> to vector<4x1xf32>
    %9 = vector.extract_strided_slice %1 {offsets = [1, 0], sizes = [1, 512], strides = [1, 1]} : vector<8x512xf32> to vector<1x512xf32>
    %10 = vector.broadcast %8 : vector<4x1xf32> to vector<4x512xf32>
    %11 = vector.broadcast %9 : vector<1x512xf32> to vector<4x512xf32>
    %12 = arith.mulf %10, %11 : vector<4x512xf32>
    %13 = arith.addf %7, %12 : vector<4x512xf32>
    %14 = vector.extract_strided_slice %2 {offsets = [0, 2], sizes = [4, 1], strides = [1, 1]} : vector<4x8xf32> to vector<4x1xf32>
    %15 = vector.extract_strided_slice %1 {offsets = [2, 0], sizes = [1, 512], strides = [1, 1]} : vector<8x512xf32> to vector<1x512xf32>
    %16 = vector.broadcast %14 : vector<4x1xf32> to vector<4x512xf32>
    %17 = vector.broadcast %15 : vector<1x512xf32> to vector<4x512xf32>
    %18 = arith.mulf %16, %17 : vector<4x512xf32>
    %19 = arith.addf %13, %18 : vector<4x512xf32>
    %20 = vector.extract_strided_slice %2 {offsets = [0, 3], sizes = [4, 1], strides = [1, 1]} : vector<4x8xf32> to vector<4x1xf32>
    %21 = vector.extract_strided_slice %1 {offsets = [3, 0], sizes = [1, 512], strides = [1, 1]} : vector<8x512xf32> to vector<1x512xf32>
    %22 = vector.broadcast %20 : vector<4x1xf32> to vector<4x512xf32>
    %23 = vector.broadcast %21 : vector<1x512xf32> to vector<4x512xf32>
    %24 = arith.mulf %22, %23 : vector<4x512xf32>
    %25 = arith.addf %19, %24 : vector<4x512xf32>
    %26 = vector.extract_strided_slice %2 {offsets = [0, 4], sizes = [4, 1], strides = [1, 1]} : vector<4x8xf32> to vector<4x1xf32>
    %27 = vector.extract_strided_slice %1 {offsets = [4, 0], sizes = [1, 512], strides = [1, 1]} : vector<8x512xf32> to vector<1x512xf32>
    %28 = vector.broadcast %26 : vector<4x1xf32> to vector<4x512xf32>
    %29 = vector.broadcast %27 : vector<1x512xf32> to vector<4x512xf32>
    %30 = arith.mulf %28, %29 : vector<4x512xf32>
    %31 = arith.addf %25, %30 : vector<4x512xf32>
    %32 = vector.extract_strided_slice %2 {offsets = [0, 5], sizes = [4, 1], strides = [1, 1]} : vector<4x8xf32> to vector<4x1xf32>
    %33 = vector.extract_strided_slice %1 {offsets = [5, 0], sizes = [1, 512], strides = [1, 1]} : vector<8x512xf32> to vector<1x512xf32>
    %34 = vector.broadcast %32 : vector<4x1xf32> to vector<4x512xf32>
    %35 = vector.broadcast %33 : vector<1x512xf32> to vector<4x512xf32>
    %36 = arith.mulf %34, %35 : vector<4x512xf32>
    %37 = arith.addf %31, %36 : vector<4x512xf32>
    %38 = vector.extract_strided_slice %2 {offsets = [0, 6], sizes = [4, 1], strides = [1, 1]} : vector<4x8xf32> to vector<4x1xf32>
    %39 = vector.extract_strided_slice %1 {offsets = [6, 0], sizes = [1, 512], strides = [1, 1]} : vector<8x512xf32> to vector<1x512xf32>
    %40 = vector.broadcast %38 : vector<4x1xf32> to vector<4x512xf32>
    %41 = vector.broadcast %39 : vector<1x512xf32> to vector<4x512xf32>
    %42 = arith.mulf %40, %41 : vector<4x512xf32>
    %43 = arith.addf %37, %42 : vector<4x512xf32>
    %44 = vector.extract_strided_slice %2 {offsets = [0, 7], sizes = [4, 1], strides = [1, 1]} : vector<4x8xf32> to vector<4x1xf32>
    %45 = vector.extract_strided_slice %1 {offsets = [7, 0], sizes = [1, 512], strides = [1, 1]} : vector<8x512xf32> to vector<1x512xf32>
    %46 = vector.broadcast %44 : vector<4x1xf32> to vector<4x512xf32>
    %47 = vector.broadcast %45 : vector<1x512xf32> to vector<4x512xf32>
    %48 = arith.mulf %46, %47 : vector<4x512xf32>
    %49 = arith.addf %43, %48 : vector<4x512xf32>
    %50 = arith.subf %0, %49 : vector<4x512xf32>
    %51 = math.absf %50 : vector<4x512xf32>
    %52 = vector.shape_cast %51 : vector<4x512xf32> to vector<1x4x512xf32>
    %cst = arith.constant dense<0.000000e+00> : vector<1xf32>
    %53 = vector.multi_reduction <add>, %52, %cst [1, 2] : vector<1x4x512xf32> to vector<1xf32>
    %54 = vector.shape_cast %53 : vector<1xf32> to vector<1x1x1xf32>
    %55 = vector.extract %54[0, 0, 0] : f32 from vector<1x1x1xf32>
    %cst_5 = arith.constant 2.048000e+03 : f32
    %56 = arith.divf %55, %cst_5 : f32
    %c0_6 = arith.constant 0 : index
    %c0_7 = arith.constant 0 : index
    %57 = vector.load %arg3[%c0_6, %c0_7] : memref<8x4xf32, #tpu.memory_space<vmem>>, vector<8x4xf32>
    %58 = vector.extract_strided_slice %57 {offsets = [0, 0], sizes = [8, 1], strides = [1, 1]} : vector<8x4xf32> to vector<8x1xf32>
    %59 = vector.extract_strided_slice %0 {offsets = [0, 0], sizes = [1, 512], strides = [1, 1]} : vector<4x512xf32> to vector<1x512xf32>
    %60 = vector.broadcast %58 : vector<8x1xf32> to vector<8x512xf32>
    %61 = vector.broadcast %59 : vector<1x512xf32> to vector<8x512xf32>
    %62 = arith.mulf %60, %61 : vector<8x512xf32>
    %63 = vector.extract_strided_slice %57 {offsets = [0, 1], sizes = [8, 1], strides = [1, 1]} : vector<8x4xf32> to vector<8x1xf32>
    %64 = vector.extract_strided_slice %0 {offsets = [1, 0], sizes = [1, 512], strides = [1, 1]} : vector<4x512xf32> to vector<1x512xf32>
    %65 = vector.broadcast %63 : vector<8x1xf32> to vector<8x512xf32>
    %66 = vector.broadcast %64 : vector<1x512xf32> to vector<8x512xf32>
    %67 = arith.mulf %65, %66 : vector<8x512xf32>
    %68 = arith.addf %62, %67 : vector<8x512xf32>
    %69 = vector.extract_strided_slice %57 {offsets = [0, 2], sizes = [8, 1], strides = [1, 1]} : vector<8x4xf32> to vector<8x1xf32>
    %70 = vector.extract_strided_slice %0 {offsets = [2, 0], sizes = [1, 512], strides = [1, 1]} : vector<4x512xf32> to vector<1x512xf32>
    %71 = vector.broadcast %69 : vector<8x1xf32> to vector<8x512xf32>
    %72 = vector.broadcast %70 : vector<1x512xf32> to vector<8x512xf32>
    %73 = arith.mulf %71, %72 : vector<8x512xf32>
    %74 = arith.addf %68, %73 : vector<8x512xf32>
    %75 = vector.extract_strided_slice %57 {offsets = [0, 3], sizes = [8, 1], strides = [1, 1]} : vector<8x4xf32> to vector<8x1xf32>
    %76 = vector.extract_strided_slice %0 {offsets = [3, 0], sizes = [1, 512], strides = [1, 1]} : vector<4x512xf32> to vector<1x512xf32>
    %77 = vector.broadcast %75 : vector<8x1xf32> to vector<8x512xf32>
    %78 = vector.broadcast %76 : vector<1x512xf32> to vector<8x512xf32>
    %79 = arith.mulf %77, %78 : vector<8x512xf32>
    %80 = arith.addf %74, %79 : vector<8x512xf32>
    %81 = vector.extract_strided_slice %57 {offsets = [0, 0], sizes = [8, 1], strides = [1, 1]} : vector<8x4xf32> to vector<8x1xf32>
    %82 = vector.extract_strided_slice %49 {offsets = [0, 0], sizes = [1, 512], strides = [1, 1]} : vector<4x512xf32> to vector<1x512xf32>
    %83 = vector.broadcast %81 : vector<8x1xf32> to vector<8x512xf32>
    %84 = vector.broadcast %82 : vector<1x512xf32> to vector<8x512xf32>
    %85 = arith.mulf %83, %84 : vector<8x512xf32>
    %86 = vector.extract_strided_slice %57 {offsets = [0, 1], sizes = [8, 1], strides = [1, 1]} : vector<8x4xf32> to vector<8x1xf32>
    %87 = vector.extract_strided_slice %49 {offsets = [1, 0], sizes = [1, 512], strides = [1, 1]} : vector<4x512xf32> to vector<1x512xf32>
    %88 = vector.broadcast %86 : vector<8x1xf32> to vector<8x512xf32>
    %89 = vector.broadcast %87 : vector<1x512xf32> to vector<8x512xf32>
    %90 = arith.mulf %88, %89 : vector<8x512xf32>
    %91 = arith.addf %85, %90 : vector<8x512xf32>
    %92 = vector.extract_strided_slice %57 {offsets = [0, 2], sizes = [8, 1], strides = [1, 1]} : vector<8x4xf32> to vector<8x1xf32>
    %93 = vector.extract_strided_slice %49 {offsets = [2, 0], sizes = [1, 512], strides = [1, 1]} : vector<4x512xf32> to vector<1x512xf32>
    %94 = vector.broadcast %92 : vector<8x1xf32> to vector<8x512xf32>
    %95 = vector.broadcast %93 : vector<1x512xf32> to vector<8x512xf32>
    %96 = arith.mulf %94, %95 : vector<8x512xf32>
    %97 = arith.addf %91, %96 : vector<8x512xf32>
    %98 = vector.extract_strided_slice %57 {offsets = [0, 3], sizes = [8, 1], strides = [1, 1]} : vector<8x4xf32> to vector<8x1xf32>
    %99 = vector.extract_strided_slice %49 {offsets = [3, 0], sizes = [1, 512], strides = [1, 1]} : vector<4x512xf32> to vector<1x512xf32>
    %100 = vector.broadcast %98 : vector<8x1xf32> to vector<8x512xf32>
    %101 = vector.broadcast %99 : vector<1x512xf32> to vector<8x512xf32>
    %102 = arith.mulf %100, %101 : vector<8x512xf32>
    %103 = arith.addf %97, %102 : vector<8x512xf32>
    %104 = arith.mulf %80, %80 : vector<8x512xf32>
    %cst_8 = arith.constant dense<0.000000e+00> : vector<512xf32>
    %105 = vector.multi_reduction <add>, %104, %cst_8 [0] : vector<8x512xf32> to vector<512xf32>
    %106 = vector.shape_cast %105 : vector<512xf32> to vector<1x512xf32>
    %cst_9 = arith.constant 1.000000e-10 : f32
    %107 = vector.broadcast %cst_9 : f32 to vector<1x512xf32>
    %108 = arith.addf %106, %107 : vector<1x512xf32>
    %109 = math.rsqrt %108 : vector<1x512xf32>
    %110 = vector.broadcast %109 : vector<1x512xf32> to vector<8x512xf32>
    %111 = arith.mulf %80, %110 : vector<8x512xf32>
    %112 = arith.mulf %103, %103 : vector<8x512xf32>
    %cst_10 = arith.constant dense<0.000000e+00> : vector<512xf32>
    %113 = vector.multi_reduction <add>, %112, %cst_10 [0] : vector<8x512xf32> to vector<512xf32>
    %114 = vector.shape_cast %113 : vector<512xf32> to vector<1x512xf32>
    %cst_11 = arith.constant 1.000000e-10 : f32
    %115 = vector.broadcast %cst_11 : f32 to vector<1x512xf32>
    %116 = arith.addf %114, %115 : vector<1x512xf32>
    %117 = math.rsqrt %116 : vector<1x512xf32>
    %118 = vector.broadcast %117 : vector<1x512xf32> to vector<8x512xf32>
    %119 = arith.mulf %103, %118 : vector<8x512xf32>
    %120 = arith.subf %111, %119 : vector<8x512xf32>
    %121 = arith.subf %111, %119 : vector<8x512xf32>
    %122 = arith.mulf %120, %121 : vector<8x512xf32>
    %c0_12 = arith.constant 0 : index
    %c0_13 = arith.constant 0 : index
    %123 = vector.load %arg4[%c0_12, %c0_13] : memref<8x1xf32, #tpu.memory_space<vmem>>, vector<8x1xf32>
    %124 = vector.broadcast %123 : vector<8x1xf32> to vector<8x512xf32>
    %125 = arith.mulf %124, %122 : vector<8x512xf32>
    %126 = vector.shape_cast %125 : vector<8x512xf32> to vector<1x8x512xf32>
    %cst_14 = arith.constant dense<0.000000e+00> : vector<1xf32>
    %127 = vector.multi_reduction <add>, %126, %cst_14 [1, 2] : vector<1x8x512xf32> to vector<1xf32>
    %128 = vector.shape_cast %127 : vector<1xf32> to vector<1x1x1xf32>
    %129 = vector.extract %128[0, 0, 0] : f32 from vector<1x1x1xf32>
    %cst_15 = arith.constant 5.120000e+02 : f32
    %130 = arith.divf %129, %cst_15 : f32
    %cst_16 = arith.constant 1.000000e-01 : f32
    %131 = arith.mulf %cst_16, %130 : f32
    %132 = arith.addf %56, %131 : f32
    %cst_17 = arith.constant dense<0.000000e+00> : vector<4xf32>
    %133 = vector.multi_reduction <add>, %49, %cst_17 [1] : vector<4x512xf32> to vector<4xf32>
    %134 = vector.shape_cast %133 : vector<4xf32> to vector<4x1xf32>
    %cst_18 = arith.constant 5.120000e+02 : f32
    %135 = vector.broadcast %cst_18 : f32 to vector<4x1xf32>
    %136 = arith.divf %134, %135 : vector<4x1xf32>
    %c0_19 = arith.constant 0 : index
    %c0_20 = arith.constant 0 : index
    %137 = vector.load %arg5[%c0_19, %c0_20] : memref<4x1xf32, #tpu.memory_space<vmem>>, vector<4x1xf32>
    %138 = arith.mulf %137, %136 : vector<4x1xf32>
    %139 = vector.shape_cast %138 : vector<4x1xf32> to vector<1x4x1xf32>
    %cst_21 = arith.constant dense<0.000000e+00> : vector<1xf32>
    %140 = vector.multi_reduction <add>, %139, %cst_21 [1, 2] : vector<1x4x1xf32> to vector<1xf32>
    %141 = vector.shape_cast %140 : vector<1xf32> to vector<1x1x1xf32>
    %142 = vector.extract %141[0, 0, 0] : f32 from vector<1x1x1xf32>
    %c0_22 = arith.constant 0 : index
    %143 = memref.load %arg6[%c0_22] : memref<1xf32, #tpu.memory_space<smem>>
    %144 = arith.addf %142, %143 : f32
    %cst_23 = arith.constant 0.000000e+00 : f32
    %145 = arith.subf %cst_23, %144 : f32
    %c0_24 = arith.constant 0 : index
    %146 = memref.load %arg7[%c0_24] : memref<4xf32, #tpu.memory_space<smem>>
    memref.store %56, %arg7[%c0_24] : memref<4xf32, #tpu.memory_space<smem>>
    %c1 = arith.constant 1 : index
    %147 = memref.load %arg7[%c1] : memref<4xf32, #tpu.memory_space<smem>>
    memref.store %130, %arg7[%c1] : memref<4xf32, #tpu.memory_space<smem>>
    %c2 = arith.constant 2 : index
    %148 = memref.load %arg7[%c2] : memref<4xf32, #tpu.memory_space<smem>>
    memref.store %132, %arg7[%c2] : memref<4xf32, #tpu.memory_space<smem>>
    %c3 = arith.constant 3 : index
    %149 = memref.load %arg7[%c3] : memref<4xf32, #tpu.memory_space<smem>>
    memref.store %145, %arg7[%c3] : memref<4xf32, #tpu.memory_space<smem>>
    return
  }
}

</mosaic_0001>

<llo_original>
// kernel: tpu_custom_call.1
$region0: #{tpu_custom_call.1}
  #allocation0 [shape = 'u32[]', space=smem, size = 0x4, offset = 0x4, fixed_abs, tag = 'smem constant byte address 0x4 - core index']
  #allocation1 [shape = 'u32[144,128]{1,0:T(1,128)}', space=vmem, size = 0x12000, scoped, tag = 'internal scratch']
  #allocation2 [shape = 'f32[1]{0:T(128)S(6)}', space=smem, size = 0x200, scoped, tag = 'scoped memory for tpu_custom_call.1']
  %s0 = inlined_call_operand.vmem [shape: f32[4,512], index: 0, kind: input, shape index: {}]
  %s1 = inlined_call_operand.hbm [shape: f32[8,512], index: 1, kind: input, shape index: {}]
  %s2 = inlined_call_operand.vmem [shape: f32[4,8], index: 2, kind: input, shape index: {}]
  %s3 = inlined_call_operand.vmem [shape: f32[8,4], index: 3, kind: input, shape index: {}]
  %s4 = inlined_call_operand.vmem [shape: f32[8,1], index: 4, kind: input, shape index: {}]
  %s5 = inlined_call_operand.vmem [shape: f32[4,1], index: 5, kind: input, shape index: {}]
  %s6 = inlined_call_operand.<no memory space> [shape: f32[1], index: 6, kind: input, shape index: {}]
  %s7 = inlined_call_operand.hbm [shape: f32[4], index: 7, kind: output, shape index: {}]
  %s8 = sld [smem:[#allocation0]]
  $region42: #{tpu_custom_call.1} parent=0
    _
  %s10 = ssub.s32 1, %s8
  %s11 = scalar_select 0, %s10, %s8
  %12 = sst [smem:[#allocation2]] %s6
  $region1: #{tpu_custom_call.1} parent=0
    #allocation3 [shape = 'u8[16384]{0}', space=vmem, size = 0x4000, scoped, tag = 'input window, operand 1, single buffered']
    #allocation4 [shape = 's32[1]{0}', space=sflag, size = 0x4, scoped, tag = 'scoped memory for tpu_custom_call.1']
    #allocation5 [shape = 's32[1]{0}', space=sflag, size = 0x4, scoped, tag = 'scoped memory for tpu_custom_call.1']
    #allocation6 [shape = 'u8[512]{0}', space=smem, size = 0x200, scoped, tag = 'output window, operand 0, single buffered']
    %13 = vsyncpa [#allocation4], 0
    %14 = vsyncpa [#allocation5], 0
    // Predicated region
    $region2: #{tpu_custom_call.1} parent=1 // pred_check
      _
    $region3: #{tpu_custom_call.1} parent=1 // pred_check_branch
      %16 = sbr.rel (0) target = $region5
    $region4: #{tpu_custom_call.1} parent=1 // pred_region
      _
    $region5: #{tpu_custom_call.1} parent=1 // pred_fallthru
      _
    // Predicated region
    $region6: #{tpu_custom_call.1} parent=1 // pred_check
      _
    $region7: #{tpu_custom_call.1} parent=1 // pred_check_branch
      %18 = sbr.rel (0) target = $region9
    $region8: #{tpu_custom_call.1} parent=1 // pred_region
      %s20 = ssub.s32 512, 512
      %21 = vsyncadd [#allocation4], %s20
      %s23 = sshll.u32 [#allocation3], 4
      %s24 = int_to_ptr.vmem [resolvable:$true] %s23
      %26 = dma.hbm_to_vmem [thread:$0]  %s1, 512, %s24, [#allocation4]
    $region9: #{tpu_custom_call.1} parent=1 // pred_fallthru
      _
    // Predicated region
    $region10: #{tpu_custom_call.1} parent=1 // pred_check
      _
    $region11: #{tpu_custom_call.1} parent=1 // pred_check_branch
      %28 = sbr.rel (0) target = $region13
    $region12: #{tpu_custom_call.1} parent=1 // pred_region
      _
    $region13: #{tpu_custom_call.1} parent=1 // pred_fallthru
      _
    // Predicated region
    $region14: #{tpu_custom_call.1} parent=1 // pred_check
      _
    $region15: #{tpu_custom_call.1} parent=1 // pred_check_branch
      %30 = sbr.rel (0) target = $region17
    $region16: #{tpu_custom_call.1} parent=1 // pred_region
      _
    $region17: #{tpu_custom_call.1} parent=1 // pred_fallthru
      _
    // Predicated region
    $region18: #{tpu_custom_call.1} parent=1 // pred_check
      _
    $region19: #{tpu_custom_call.1} parent=1 // pred_check_branch
      %32 = sbr.rel (0) target = $region21
    $region20: #{tpu_custom_call.1} parent=1 // pred_region
      _
    $region21: #{tpu_custom_call.1} parent=1 // pred_fallthru
      _
    // Predicated region
    $region22: #{tpu_custom_call.1} parent=1 // pred_check
      _
    $region23: #{tpu_custom_call.1} parent=1 // pred_check_branch
      %34 = sbr.rel (0) target = $region25
    $region24: #{tpu_custom_call.1} parent=1 // pred_region
      _
    $region25: #{tpu_custom_call.1} parent=1 // pred_fallthru
      _
    // Predicated region
    $region26: #{tpu_custom_call.1} parent=1 // pred_check
      _
    $region27: #{tpu_custom_call.1} parent=1 // pred_check_branch
      %36 = sbr.rel (0) target = $region29
    $region28: #{tpu_custom_call.1} parent=1 // pred_region
      _
    $region29: #{tpu_custom_call.1} parent=1 // pred_fallthru
      _
    // Predicated region
    $region30: #{tpu_custom_call.1} parent=1 // pred_check
      _
    $region31: #{tpu_custom_call.1} parent=1 // pred_check_branch
      %38 = sbr.rel (0) target = $region33
    $region32: #{tpu_custom_call.1} parent=1 // pred_region
      %39 = dma.done [#allocation4], 512
    $region33: #{tpu_custom_call.1} parent=1 // pred_fallthru
      _
    %v40 = vld [vmem:[%s0] sm:$0xff]
    %v41 = vld [vmem:[%s0 + $0x8] sm:$0xff]
    %v42 = vld [vmem:[#allocation3] sm:$0xff]
    %v43 = vld [vmem:[#allocation3 + $0x8] sm:$0xff]
    %v44 = vld [vmem:[#allocation3 + $0x10] sm:$0xff]
    %v45 = vld [vmem:[#allocation3 + $0x18] sm:$0xff]
    %v46 = vld [vmem:[%s2] sm:$0xf]
    %48 = vset.pattern.permute.xlu0 0
    %49 = vperm.xlu0 %48, %v46
    %v50 = vpop.permute.xlu0 %49
    %v52 = vlaneseq
    %v53 = vshrl.u32 %v52, 7
    %v54 = vsub.s32 0, %v53
    %v55 = vrot.slane %v42, %v54
    %v56 = vlaneseq
    %v57 = vshrl.u32 %v56, 7
    %v58 = vsub.s32 0, %v57
    %v59 = vrot.slane %v43, %v58
    %v60 = vlaneseq
    %v61 = vshrl.u32 %v60, 7
    %v62 = vsub.s32 0, %v61
    %v63 = vrot.slane %v44, %v62
    %v64 = vlaneseq
    %v65 = vshrl.u32 %v64, 7
    %v66 = vsub.s32 0, %v65
    %v67 = vrot.slane %v45, %v66
    %v68 = vmul.f32 %v50, %v55
    %v69 = vmul.f32 %v50, %v59
    %v70 = vmul.f32 %v50, %v63
    %v71 = vmul.f32 %v50, %v67
    %72 = vset.pattern.permute.xlu0 1
    %73 = vperm.xlu0 %72, %v46
    %v74 = vpop.permute.xlu0 %73
    %v76 = vlaneseq
    %v77 = vshrl.u32 %v76, 7
    %v78 = vsub.s32 1, %v77
    %v79 = vrot.slane %v42, %v78
    %v80 = vlaneseq
    %v81 = vshrl.u32 %v80, 7
    %v82 = vsub.s32 1, %v81
    %v83 = vrot.slane %v43, %v82
    %v84 = vlaneseq
    %v85 = vshrl.u32 %v84, 7
    %v86 = vsub.s32 1, %v85
    %v87 = vrot.slane %v44, %v86
    %v88 = vlaneseq
    %v89 = vshrl.u32 %v88, 7
    %v90 = vsub.s32 1, %v89
    %v91 = vrot.slane %v45, %v90
    %v92 = vmul.f32 %v74, %v79
    %v93 = vmul.f32 %v74, %v83
    %v94 = vmul.f32 %v74, %v87
    %v95 = vmul.f32 %v74, %v91
    %v96 = vadd.f32 %v68, %v92
    %v97 = vadd.f32 %v69, %v93
    %v98 = vadd.f32 %v70, %v94
    %v99 = vadd.f32 %v71, %v95
    %100 = vset.pattern.permute.xlu0 2
    %101 = vperm.xlu0 %100, %v46
    %v102 = vpop.permute.xlu0 %101
    %v104 = vlaneseq
    %v105 = vshrl.u32 %v104, 7
    %v106 = vsub.s32 2, %v105
    %v107 = vrot.slane %v42, %v106
    %v108 = vlaneseq
    %v109 = vshrl.u32 %v108, 7
    %v110 = vsub.s32 2, %v109
    %v111 = vrot.slane %v43, %v110
    %v112 = vlaneseq
    %v113 = vshrl.u32 %v112, 7
    %v114 = vsub.s32 2, %v113
    %v115 = vrot.slane %v44, %v114
    %v116 = vlaneseq
    %v117 = vshrl.u32 %v116, 7
    %v118 = vsub.s32 2, %v117
    %v119 = vrot.slane %v45, %v118
    %v120 = vmul.f32 %v102, %v107
    %v121 = vmul.f32 %v102, %v111
    %v122 = vmul.f32 %v102, %v115
    %v123 = vmul.f32 %v102, %v119
    %v124 = vadd.f32 %v96, %v120
    %v125 = vadd.f32 %v97, %v121
    %v126 = vadd.f32 %v98, %v122
    %v127 = vadd.f32 %v99, %v123
    %128 = vset.pattern.permute.xlu0 3
    %129 = vperm.xlu0 %128, %v46
    %v130 = vpop.permute.xlu0 %129
    %v132 = vlaneseq
    %v133 = vshrl.u32 %v132, 7
    %v134 = vsub.s32 3, %v133
    %v135 = vrot.slane %v42, %v134
    %v136 = vlaneseq
    %v137 = vshrl.u32 %v136, 7
    %v138 = vsub.s32 3, %v137
    %v139 = vrot.slane %v43, %v138
    %v140 = vlaneseq
    %v141 = vshrl.u32 %v140, 7
    %v142 = vsub.s32 3, %v141
    %v143 = vrot.slane %v44, %v142
    %v144 = vlaneseq
    %v145 = vshrl.u32 %v144, 7
    %v146 = vsub.s32 3, %v145
    %v147 = vrot.slane %v45, %v146
    %v148 = vmul.f32 %v130, %v135
    %v149 = vmul.f32 %v130, %v139
    %v150 = vmul.f32 %v130, %v143
    %v151 = vmul.f32 %v130, %v147
    %v152 = vadd.f32 %v124, %v148
    %v153 = vadd.f32 %v125, %v149
    %v154 = vadd.f32 %v126, %v150
    %v155 = vadd.f32 %v127, %v151
    %156 = vset.pattern.permute.xlu0 4
    %157 = vperm.xlu0 %156, %v46
    %v158 = vpop.permute.xlu0 %157
    %v160 = vlaneseq
    %v161 = vshrl.u32 %v160, 7
    %v162 = vsub.s32 4, %v161
    %v163 = vrot.slane %v42, %v162
    %v164 = vlaneseq
    %v165 = vshrl.u32 %v164, 7
    %v166 = vsub.s32 4, %v165
    %v167 = vrot.slane %v43, %v166
    %v168 = vlaneseq
    %v169 = vshrl.u32 %v168, 7
    %v170 = vsub.s32 4, %v169
    %v171 = vrot.slane %v44, %v170
    %v172 = vlaneseq
    %v173 = vshrl.u32 %v172, 7
    %v174 = vsub.s32 4, %v173
    %v175 = vrot.slane %v45, %v174
    %v176 = vmul.f32 %v158, %v163
    %v177 = vmul.f32 %v158, %v167
    %v178 = vmul.f32 %v158, %v171
    %v179 = vmul.f32 %v158, %v175
    %v180 = vadd.f32 %v152, %v176
    %v181 = vadd.f32 %v153, %v177
    %v182 = vadd.f32 %v154, %v178
    %v183 = vadd.f32 %v155, %v179
    %184 = vset.pattern.permute.xlu0 5
    %185 = vperm.xlu0 %184, %v46
    %v186 = vpop.permute.xlu0 %185
    %v188 = vlaneseq
    %v189 = vshrl.u32 %v188, 7
    %v190 = vsub.s32 5, %v189
    %v191 = vrot.slane %v42, %v190
    %v192 = vlaneseq
    %v193 = vshrl.u32 %v192, 7
    %v194 = vsub.s32 5, %v193
    %v195 = vrot.slane %v43, %v194
    %v196 = vlaneseq
    %v197 = vshrl.u32 %v196, 7
    %v198 = vsub.s32 5, %v197
    %v199 = vrot.slane %v44, %v198
    %v200 = vlaneseq
    %v201 = vshrl.u32 %v200, 7
    %v202 = vsub.s32 5, %v201
    %v203 = vrot.slane %v45, %v202
    %v204 = vmul.f32 %v186, %v191
    %v205 = vmul.f32 %v186, %v195
    %v206 = vmul.f32 %v186, %v199
    %v207 = vmul.f32 %v186, %v203
    %v208 = vadd.f32 %v180, %v204
    %v209 = vadd.f32 %v181, %v205
    %v210 = vadd.f32 %v182, %v206
    %v211 = vadd.f32 %v183, %v207
    %212 = vset.pattern.permute.xlu0 6
    %213 = vperm.xlu0 %212, %v46
    %v214 = vpop.permute.xlu0 %213
    %v216 = vlaneseq
    %v217 = vshrl.u32 %v216, 7
    %v218 = vsub.s32 6, %v217
    %v219 = vrot.slane %v42, %v218
    %v220 = vlaneseq
    %v221 = vshrl.u32 %v220, 7
    %v222 = vsub.s32 6, %v221
    %v223 = vrot.slane %v43, %v222
    %v224 = vlaneseq
    %v225 = vshrl.u32 %v224, 7
    %v226 = vsub.s32 6, %v225
    %v227 = vrot.slane %v44, %v226
    %v228 = vlaneseq
    %v229 = vshrl.u32 %v228, 7
    %v230 = vsub.s32 6, %v229
    %v231 = vrot.slane %v45, %v230
    %v232 = vmul.f32 %v214, %v219
    %v233 = vmul.f32 %v214, %v223
    %v234 = vmul.f32 %v214, %v227
    %v235 = vmul.f32 %v214, %v231
    %v236 = vadd.f32 %v208, %v232
    %v237 = vadd.f32 %v209, %v233
    %v238 = vadd.f32 %v210, %v234
    %v239 = vadd.f32 %v211, %v235
    %240 = vset.pattern.permute.xlu0 7
    %241 = vperm.xlu0 %240, %v46
    %v242 = vpop.permute.xlu0 %241
    %v244 = vlaneseq
    %v245 = vshrl.u32 %v244, 7
    %v246 = vsub.s32 7, %v245
    %v247 = vrot.slane %v42, %v246
    %v248 = vlaneseq
    %v249 = vshrl.u32 %v248, 7
    %v250 = vsub.s32 7, %v249
    %v251 = vrot.slane %v43, %v250
    %v252 = vlaneseq
    %v253 = vshrl.u32 %v252, 7
    %v254 = vsub.s32 7, %v253
    %v255 = vrot.slane %v44, %v254
    %v256 = vlaneseq
    %v257 = vshrl.u32 %v256, 7
    %v258 = vsub.s32 7, %v257
    %v259 = vrot.slane %v45, %v258
    %v260 = vmul.f32 %v242, %v247
    %v261 = vmul.f32 %v242, %v251
    %v262 = vmul.f32 %v242, %v255
    %v263 = vmul.f32 %v242, %v259
    %v264 = vadd.f32 %v236, %v260
    %v265 = vadd.f32 %v237, %v261
    %v266 = vadd.f32 %v238, %v262
    %v267 = vadd.f32 %v239, %v263
    %v272 = vcombine.low %v264, %v265
    %v273 = vcombine.low %v266, %v267
    %v276 = vsub.f32 %v40, %v272
    %v277 = vsub.f32 %v41, %v273
    %v278 = vand.u32 2147483647, %v276
    %v279 = vand.u32 2147483647, %v277
    %v282 = vcombine.high %v278, %v278
    %v283 = vcombine.high %v279, %v279
    %vm286 = vcmask 1043456
    %v287 = vsel %vm286, %v278, 0.0
    %v288 = vsel %vm286, %v282, 0.0
    %v289 = vadd.f32 %v287, %v288
    %v290 = vsel %vm286, %v279, 0.0
    %v291 = vadd.f32 %v289, %v290
    %v292 = vsel %vm286, %v283, 0.0
    %v293 = vadd.f32 %v291, %v292
    %294 = vadd.xlane.f32.xlu0 %v293
    %v295 = vpop.xlane.xlu0 %294
    %v296 = vrot.slane %v295, 4
    %v297 = vadd.f32 %v295, %v296
    %v298 = vrot.slane %v297, 2
    %v299 = vadd.f32 %v297, %v298
    %v300 = vrot.slane %v299, 1
    %v301 = vadd.f32 %v299, %v300
    %s302 = vtos %v301
    %v303 = vrcp.pop 2048.0
    %s304 = vtos %v303
    %s305 = smul.f32 %s302, %s304
    %v306 = vld [vmem:[%s3] sm:$0xff]
    %308 = vset.pattern.permute.xlu0 0
    %309 = vperm.xlu0 %308, %v306
    %v310 = vpop.permute.xlu0 %309
    %v314 = vlaneseq
    %v315 = vshrl.u32 %v314, 7
    %v316 = vsub.s32 0, %v315
    %v317 = vrot.slane %v40, %v316
    %v318 = vlaneseq
    %v319 = vshrl.u32 %v318, 7
    %v320 = vsub.s32 4, %v319
    %v321 = vrot.slane %v40, %v320
    %v322 = vlaneseq
    %v323 = vshrl.u32 %v322, 7
    %v324 = vsub.s32 0, %v323
    %v325 = vrot.slane %v41, %v324
    %v326 = vlaneseq
    %v327 = vshrl.u32 %v326, 7
    %v328 = vsub.s32 4, %v327
    %v329 = vrot.slane %v41, %v328
    %v334 = vlaneseq
    %v335 = vshrl.u32 %v334, 7
    %v336 = vsub.s32 0, %v335
    %v337 = vrot.slane %v317, %v336
    %v338 = vlaneseq
    %v339 = vshrl.u32 %v338, 7
    %v340 = vsub.s32 0, %v339
    %v341 = vrot.slane %v321, %v340
    %v342 = vlaneseq
    %v343 = vshrl.u32 %v342, 7
    %v344 = vsub.s32 0, %v343
    %v345 = vrot.slane %v325, %v344
    %v346 = vlaneseq
    %v347 = vshrl.u32 %v346, 7
    %v348 = vsub.s32 0, %v347
    %v349 = vrot.slane %v329, %v348
    %v350 = vmul.f32 %v310, %v337
    %v351 = vmul.f32 %v310, %v341
    %v352 = vmul.f32 %v310, %v345
    %v353 = vmul.f32 %v310, %v349
    %354 = vset.pattern.permute.xlu0 1
    %355 = vperm.xlu0 %354, %v306
    %v356 = vpop.permute.xlu0 %355
    %v358 = vlaneseq
    %v359 = vshrl.u32 %v358, 7
    %v360 = vsub.s32 1, %v359
    %v361 = vrot.slane %v40, %v360
    %v362 = vlaneseq
    %v363 = vshrl.u32 %v362, 7
    %v364 = vsub.s32 5, %v363
    %v365 = vrot.slane %v40, %v364
    %v366 = vlaneseq
    %v367 = vshrl.u32 %v366, 7
    %v368 = vsub.s32 1, %v367
    %v369 = vrot.slane %v41, %v368
    %v370 = vlaneseq
    %v371 = vshrl.u32 %v370, 7
    %v372 = vsub.s32 5, %v371
    %v373 = vrot.slane %v41, %v372
    %v378 = vlaneseq
    %v379 = vshrl.u32 %v378, 7
    %v380 = vsub.s32 1, %v379
    %v381 = vrot.slane %v361, %v380
    %v382 = vlaneseq
    %v383 = vshrl.u32 %v382, 7
    %v384 = vsub.s32 1, %v383
    %v385 = vrot.slane %v365, %v384
    %v386 = vlaneseq
    %v387 = vshrl.u32 %v386, 7
    %v388 = vsub.s32 1, %v387
    %v389 = vrot.slane %v369, %v388
    %v390 = vlaneseq
    %v391 = vshrl.u32 %v390, 7
    %v392 = vsub.s32 1, %v391
    %v393 = vrot.slane %v373, %v392
    %v394 = vmul.f32 %v356, %v381
    %v395 = vmul.f32 %v356, %v385
    %v396 = vmul.f32 %v356, %v389
    %v397 = vmul.f32 %v356, %v393
    %v398 = vadd.f32 %v350, %v394
    %v399 = vadd.f32 %v351, %v395
    %v400 = vadd.f32 %v352, %v396
    %v401 = vadd.f32 %v353, %v397
    %402 = vset.pattern.permute.xlu0 2
    %403 = vperm.xlu0 %402, %v306
    %v404 = vpop.permute.xlu0 %403
    %v406 = vlaneseq
    %v407 = vshrl.u32 %v406, 7
    %v408 = vsub.s32 2, %v407
    %v409 = vrot.slane %v40, %v408
    %v410 = vlaneseq
    %v411 = vshrl.u32 %v410, 7
    %v412 = vsub.s32 6, %v411
    %v413 = vrot.slane %v40, %v412
    %v414 = vlaneseq
    %v415 = vshrl.u32 %v414, 7
    %v416 = vsub.s32 2, %v415
    %v417 = vrot.slane %v41, %v416
    %v418 = vlaneseq
    %v419 = vshrl.u32 %v418, 7
    %v420 = vsub.s32 6, %v419
    %v421 = vrot.slane %v41, %v420
    %v426 = vlaneseq
    %v427 = vshrl.u32 %v426, 7
    %v428 = vsub.s32 2, %v427
    %v429 = vrot.slane %v409, %v428
    %v430 = vlaneseq
    %v431 = vshrl.u32 %v430, 7
    %v432 = vsub.s32 2, %v431
    %v433 = vrot.slane %v413, %v432
    %v434 = vlaneseq
    %v435 = vshrl.u32 %v434, 7
    %v436 = vsub.s32 2, %v435
    %v437 = vrot.slane %v417, %v436
    %v438 = vlaneseq
    %v439 = vshrl.u32 %v438, 7
    %v440 = vsub.s32 2, %v439
    %v441 = vrot.slane %v421, %v440
    %v442 = vmul.f32 %v404, %v429
    %v443 = vmul.f32 %v404, %v433
    %v444 = vmul.f32 %v404, %v437
    %v445 = vmul.f32 %v404, %v441
    %v446 = vadd.f32 %v398, %v442
    %v447 = vadd.f32 %v399, %v443
    %v448 = vadd.f32 %v400, %v444
    %v449 = vadd.f32 %v401, %v445
    %450 = vset.pattern.permute.xlu0 3
    %451 = vperm.xlu0 %450, %v306
    %v452 = vpop.permute.xlu0 %451
    %v454 = vlaneseq
    %v455 = vshrl.u32 %v454, 7
    %v456 = vsub.s32 3, %v455
    %v457 = vrot.slane %v40, %v456
    %v458 = vlaneseq
    %v459 = vshrl.u32 %v458, 7
    %v460 = vsub.s32 7, %v459
    %v461 = vrot.slane %v40, %v460
    %v462 = vlaneseq
    %v463 = vshrl.u32 %v462, 7
    %v464 = vsub.s32 3, %v463
    %v465 = vrot.slane %v41, %v464
    %v466 = vlaneseq
    %v467 = vshrl.u32 %v466, 7
    %v468 = vsub.s32 7, %v467
    %v469 = vrot.slane %v41, %v468
    %v474 = vlaneseq
    %v475 = vshrl.u32 %v474, 7
    %v476 = vsub.s32 3, %v475
    %v477 = vrot.slane %v457, %v476
    %v478 = vlaneseq
    %v479 = vshrl.u32 %v478, 7
    %v480 = vsub.s32 3, %v479
    %v481 = vrot.slane %v461, %v480
    %v482 = vlaneseq
    %v483 = vshrl.u32 %v482, 7
    %v484 = vsub.s32 3, %v483
    %v485 = vrot.slane %v465, %v484
    %v486 = vlaneseq
    %v487 = vshrl.u32 %v486, 7
    %v488 = vsub.s32 3, %v487
    %v489 = vrot.slane %v469, %v488
    %v490 = vmul.f32 %v452, %v477
    %v491 = vmul.f32 %v452, %v481
    %v492 = vmul.f32 %v452, %v485
    %v493 = vmul.f32 %v452, %v489
    %v494 = vadd.f32 %v446, %v490
    %v495 = vadd.f32 %v447, %v491
    %v496 = vadd.f32 %v448, %v492
    %v497 = vadd.f32 %v449, %v493
    %v498 = vlaneseq
    %v499 = vshrl.u32 %v498, 7
    %v500 = vsub.s32 0, %v499
    %v501 = vrot.slane %v264, %v500
    %v502 = vlaneseq
    %v503 = vshrl.u32 %v502, 7
    %v504 = vsub.s32 0, %v503
    %v505 = vrot.slane %v265, %v504
    %v506 = vlaneseq
    %v507 = vshrl.u32 %v506, 7
    %v508 = vsub.s32 0, %v507
    %v509 = vrot.slane %v266, %v508
    %v510 = vlaneseq
    %v511 = vshrl.u32 %v510, 7
    %v512 = vsub.s32 0, %v511
    %v513 = vrot.slane %v267, %v512
    %v514 = vmul.f32 %v310, %v501
    %v515 = vmul.f32 %v310, %v505
    %v516 = vmul.f32 %v310, %v509
    %v517 = vmul.f32 %v310, %v513
    %v518 = vlaneseq
    %v519 = vshrl.u32 %v518, 7
    %v520 = vsub.s32 1, %v519
    %v521 = vrot.slane %v264, %v520
    %v522 = vlaneseq
    %v523 = vshrl.u32 %v522, 7
    %v524 = vsub.s32 1, %v523
    %v525 = vrot.slane %v265, %v524
    %v526 = vlaneseq
    %v527 = vshrl.u32 %v526, 7
    %v528 = vsub.s32 1, %v527
    %v529 = vrot.slane %v266, %v528
    %v530 = vlaneseq
    %v531 = vshrl.u32 %v530, 7
    %v532 = vsub.s32 1, %v531
    %v533 = vrot.slane %v267, %v532
    %v534 = vmul.f32 %v356, %v521
    %v535 = vmul.f32 %v356, %v525
    %v536 = vmul.f32 %v356, %v529
    %v537 = vmul.f32 %v356, %v533
    %v538 = vadd.f32 %v514, %v534
    %v539 = vadd.f32 %v515, %v535
    %v540 = vadd.f32 %v516, %v536
    %v541 = vadd.f32 %v517, %v537
    %v542 = vlaneseq
    %v543 = vshrl.u32 %v542, 7
    %v544 = vsub.s32 2, %v543
    %v545 = vrot.slane %v264, %v544
    %v546 = vlaneseq
    %v547 = vshrl.u32 %v546, 7
    %v548 = vsub.s32 2, %v547
    %v549 = vrot.slane %v265, %v548
    %v550 = vlaneseq
    %v551 = vshrl.u32 %v550, 7
    %v552 = vsub.s32 2, %v551
    %v553 = vrot.slane %v266, %v552
    %v554 = vlaneseq
    %v555 = vshrl.u32 %v554, 7
    %v556 = vsub.s32 2, %v555
    %v557 = vrot.slane %v267, %v556
    %v558 = vmul.f32 %v404, %v545
    %v559 = vmul.f32 %v404, %v549
    %v560 = vmul.f32 %v404, %v553
    %v561 = vmul.f32 %v404, %v557
    %v562 = vadd.f32 %v538, %v558
    %v563 = vadd.f32 %v539, %v559
    %v564 = vadd.f32 %v540, %v560
    %v565 = vadd.f32 %v541, %v561
    %v566 = vlaneseq
    %v567 = vshrl.u32 %v566, 7
    %v568 = vsub.s32 3, %v567
    %v569 = vrot.slane %v264, %v568
    %v570 = vlaneseq
    %v571 = vshrl.u32 %v570, 7
    %v572 = vsub.s32 3, %v571
    %v573 = vrot.slane %v265, %v572
    %v574 = vlaneseq
    %v575 = vshrl.u32 %v574, 7
    %v576 = vsub.s32 3, %v575
    %v577 = vrot.slane %v266, %v576
    %v578 = vlaneseq
    %v579 = vshrl.u32 %v578, 7
    %v580 = vsub.s32 3, %v579
    %v581 = vrot.slane %v267, %v580
    %v582 = vmul.f32 %v452, %v569
    %v583 = vmul.f32 %v452, %v573
    %v584 = vmul.f32 %v452, %v577
    %v585 = vmul.f32 %v452, %v581
    %v586 = vadd.f32 %v562, %v582
    %v587 = vadd.f32 %v563, %v583
    %v588 = vadd.f32 %v564, %v584
    %v589 = vadd.f32 %v565, %v585
    %v590 = vmul.f32 %v494, %v494
    %v591 = vmul.f32 %v495, %v495
    %v592 = vmul.f32 %v496, %v496
    %v593 = vmul.f32 %v497, %v497
    %v594 = vrot.slane %v590, 4
    %v595 = vadd.f32 %v590, %v594
    %v596 = vrot.slane %v595, 2
    %v597 = vadd.f32 %v595, %v596
    %v598 = vrot.slane %v597, 1
    %v599 = vadd.f32 %v597, %v598
    %v600 = vrot.slane %v591, 4
    %v601 = vadd.f32 %v591, %v600
    %v602 = vrot.slane %v601, 2
    %v603 = vadd.f32 %v601, %v602
    %v604 = vrot.slane %v603, 1
    %v605 = vadd.f32 %v603, %v604
    %v606 = vrot.slane %v592, 4
    %v607 = vadd.f32 %v592, %v606
    %v608 = vrot.slane %v607, 2
    %v609 = vadd.f32 %v607, %v608
    %v610 = vrot.slane %v609, 1
    %v611 = vadd.f32 %v609, %v610
    %v612 = vrot.slane %v593, 4
    %v613 = vadd.f32 %v593, %v612
    %v614 = vrot.slane %v613, 2
    %v615 = vadd.f32 %v613, %v614
    %v616 = vrot.slane %v615, 1
    %v617 = vadd.f32 %v615, %v616
    %v618 = vadd.f32 %v599, 1e-10
    %v619 = vadd.f32 %v605, 1e-10
    %v620 = vadd.f32 %v611, 1e-10
    %v621 = vadd.f32 %v617, 1e-10
    %v622 = vrsqrt.pop %v618
    %v623 = vrsqrt.pop %v619
    %v624 = vrsqrt.pop %v620
    %v625 = vrsqrt.pop %v621
    %v626 = vmul.f32 %v494, %v622
    %v627 = vmul.f32 %v495, %v623
    %v628 = vmul.f32 %v496, %v624
    %v629 = vmul.f32 %v497, %v625
    %v630 = vmul.f32 %v586, %v586
    %v631 = vmul.f32 %v587, %v587
    %v632 = vmul.f32 %v588, %v588
    %v633 = vmul.f32 %v589, %v589
    %v634 = vrot.slane %v630, 4
    %v635 = vadd.f32 %v630, %v634
    %v636 = vrot.slane %v635, 2
    %v637 = vadd.f32 %v635, %v636
    %v638 = vrot.slane %v637, 1
    %v639 = vadd.f32 %v637, %v638
    %v640 = vrot.slane %v631, 4
    %v641 = vadd.f32 %v631, %v640
    %v642 = vrot.slane %v641, 2
    %v643 = vadd.f32 %v641, %v642
    %v644 = vrot.slane %v643, 1
    %v645 = vadd.f32 %v643, %v644
    %v646 = vrot.slane %v632, 4
    %v647 = vadd.f32 %v632, %v646
    %v648 = vrot.slane %v647, 2
    %v649 = vadd.f32 %v647, %v648
    %v650 = vrot.slane %v649, 1
    %v651 = vadd.f32 %v649, %v650
    %v652 = vrot.slane %v633, 4
    %v653 = vadd.f32 %v633, %v652
    %v654 = vrot.slane %v653, 2
    %v655 = vadd.f32 %v653, %v654
    %v656 = vrot.slane %v655, 1
    %v657 = vadd.f32 %v655, %v656
    %v658 = vadd.f32 %v639, 1e-10
    %v659 = vadd.f32 %v645, 1e-10
    %v660 = vadd.f32 %v651, 1e-10
    %v661 = vadd.f32 %v657, 1e-10
    %v662 = vrsqrt.pop %v658
    %v663 = vrsqrt.pop %v659
    %v664 = vrsqrt.pop %v660
    %v665 = vrsqrt.pop %v661
    %v666 = vmul.f32 %v586, %v662
    %v667 = vmul.f32 %v587, %v663
    %v668 = vmul.f32 %v588, %v664
    %v669 = vmul.f32 %v589, %v665
    %v670 = vsub.f32 %v626, %v666
    %v671 = vsub.f32 %v627, %v667
    %v672 = vsub.f32 %v628, %v668
    %v673 = vsub.f32 %v629, %v669
    %v674 = vmul.f32 %v670, %v670
    %v675 = vmul.f32 %v671, %v671
    %v676 = vmul.f32 %v672, %v672
    %v677 = vmul.f32 %v673, %v673
    %v678 = vld [vmem:[%s4] sm:$0xff]
    %680 = vset.pattern.permute.xlu0 0
    %681 = vperm.xlu0 %680, %v678
    %v682 = vpop.permute.xlu0 %681
    %v684 = vmul.f32 %v682, %v674
    %v685 = vmul.f32 %v682, %v675
    %v686 = vmul.f32 %v682, %v676
    %v687 = vmul.f32 %v682, %v677
    %v688 = vadd.f32 %v684, %v685
    %v689 = vadd.f32 %v688, %v686
    %v690 = vadd.f32 %v689, %v687
    %691 = vadd.xlane.f32.xlu0 %v690
    %v692 = vpop.xlane.xlu0 %691
    %v693 = vrot.slane %v692, 4
    %v694 = vadd.f32 %v692, %v693
    %v695 = vrot.slane %v694, 2
    %v696 = vadd.f32 %v694, %v695
    %v697 = vrot.slane %v696, 1
    %v698 = vadd.f32 %v696, %v697
    %s699 = vtos %v698
    %v700 = vrcp.pop 512.0
    %s701 = vtos %v700
    %s702 = smul.f32 %s699, %s701
    %s703 = smul.f32 %s702, 0.1
    %s704 = sadd.f32 %s305, %s703
    %v705 = vsel %vm286, %v264, 0.0
    %v706 = vsel %vm286, %v265, 0.0
    %v707 = vadd.f32 %v705, %v706
    %v708 = vsel %vm286, %v266, 0.0
    %v709 = vadd.f32 %v707, %v708
    %v710 = vsel %vm286, %v267, 0.0
    %v711 = vadd.f32 %v709, %v710
    %712 = vadd.xlane.f32.xlu0 %v711
    %v713 = vpop.xlane.xlu0 %712
    %v714 = vrcp.pop 512.0
    %v715 = vmul.f32 %v713, %v714
    %v716 = vld [vmem:[%s5] sm:$0xf]
    %v717 = vmul.f32 %v716, %v715
    %vm718 = vcmask 3072
    %v719 = vsel %vm718, %v717, 0.0
    %720 = vadd.xlane.f32.xlu0 %v719
    %v721 = vpop.xlane.xlu0 %720
    %v722 = vrot.slane %v721, 4
    %v723 = vadd.f32 %v721, %v722
    %v724 = vrot.slane %v723, 2
    %v725 = vadd.f32 %v723, %v724
    %v726 = vrot.slane %v725, 1
    %v727 = vadd.f32 %v725, %v726
    %s728 = vtos %v727
    %s729 = sld [smem:[#allocation2]]
    %s730 = sadd.f32 %s728, %s729
    %s731 = ssub.f32 0.0, %s730
    %s732 = scalar_lea.smem [#allocation6], 0
    %733 = sst [smem:[%s732]] %s305
    %s734 = scalar_lea.smem [#allocation6], 1
    %735 = sst [smem:[%s734]] %s702
    %s736 = scalar_lea.smem [#allocation6], 2
    %737 = sst [smem:[%s736]] %s704
    %s738 = scalar_lea.smem [#allocation6], 3
    %739 = sst [smem:[%s738]] %s731
    // Predicated region
    $region34: #{tpu_custom_call.1} parent=1 // pred_check
      _
    $region35: #{tpu_custom_call.1} parent=1 // pred_check_branch
      %741 = sbr.rel (0) target = $region37
    $region36: #{tpu_custom_call.1} parent=1 // pred_region
      %s743 = ssub.s32 16, 16
      %744 = vsyncadd [#allocation5], %s743
      %747 = dma.smem_to_hbm [#allocation6], 16, %s7, [#allocation5]
    $region37: #{tpu_custom_call.1} parent=1 // pred_fallthru
      _
    // Predicated region
    $region38: #{tpu_custom_call.1} parent=1 // pred_check
      _
    $region39: #{tpu_custom_call.1} parent=1 // pred_check_branch
      %749 = sbr.rel (0) target = $region41
    $region40: #{tpu_custom_call.1} parent=1 // pred_region
      %750 = dma.done [#allocation5], 16
    $region41: #{tpu_custom_call.1} parent=1 // pred_fallthru
      _
    %751 = sfence
    %752 = vsyncpa [#allocation4], 1
    %753 = vsyncpa [#allocation5], 1

</llo_original>
